<compile_context>
chip_gen: v5e
topology: v5e:2x2
jax: 0.10.0
libtpu: 0.0.40
codegen_flags: <defaults>
</compile_context>

<pallas_src>
import functools

import numpy as np

import jax
import jax.numpy as jnp
from jax.experimental import pallas as pl
from jax.experimental.pallas import tpu as pltpu


def _round_up(a, m):
    return (a + m - 1) // m * m


def _vmem_capacity_bytes():
    """Physical per-core VMEM (generation-aware); conservative fallback = 64 MiB (v7x)."""
    try:
        info = pltpu.get_tpu_info()
        for name in ("vmem_capacity_bytes", "vmem_size_bytes", "vmem_bytes"):
            cap = getattr(info, name, None)
            if cap:
                return int(cap)
    except Exception:
        pass
    return 64 * 1024 * 1024


def _vmem_estimate(tm, tn, f_pad, order_num, itemsize, use_bias):
    buf = 2                                                  # Pallas double-buffering
    est = buf * tm * f_pad * 4                               # xw0 row block (f32)
    est += buf * tm * f_pad * 4                              # output row block (f32)
    est += tm * f_pad * 4                                    # acc temporary
    if order_num > 0:
        est += buf * tm * tn * itemsize                      # adj block (streamed)
        est += buf * tn * order_num * f_pad * itemsize       # xw column block (streamed)
    if order_num > 1:
        est += 2 * tm * tn * 4                               # f32 power chain (adj_f32 + adj_pow)
        est += tm * tn * itemsize                            # per-order cast temp
    if use_bias:
        est += buf * f_pad * 4
    return est


def prepare_adjacency(adj, compute_dtype=jnp.float32):
    """Cast + zero-pad adj to a multiple of 128 once; cache and reuse across calls.

    The forward wrapper detects a prepared adjacency (square, multiple-of-128,
    matching dtype) and skips the per-call N^2 cast/pad HBM pass.
    """
    n = adj.shape[0]
    n_pad = _round_up(max(n, 128), 128)
    return jnp.pad(adj.astype(compute_dtype), ((0, n_pad - n), (0, n_pad - n)))


def gcn_kernel(*refs, order_num, use_bias, f_pad):
    """refs = (xw0 [, xw_hi, adj] [, bias], out).

    Grid = (row strips "parallel", adj-column blocks "arbitrary").
    The f32 output row block is the accumulator resident across the column axis.
    """
    xw0_ref = refs[0]
    pos = 1
    if order_num > 0:
        xw_hi_ref, adj_ref = refs[pos], refs[pos + 1]
        pos += 2
    else:
        xw_hi_ref = adj_ref = None
    b_ref = refs[pos] if use_bias else None
    o_ref = refs[-1]

    j = pl.program_id(1)

    @pl.when(j == 0)
    def _init():
        # Zeroth-order term x @ W_0 (precomputed in the wrapper) initializes the accumulator.
        o_ref[...] = xw0_ref[...]

    if order_num > 0:
        adj = adj_ref[...]                                   # (TM, TN) in compute dtype
        # Order-1 term: feed the streamed adj block straight to the MXU (no cast round trip).
        acc = jnp.dot(adj, xw_hi_ref[:, 0:f_pad],
                      preferred_element_type=jnp.float32)
        if order_num > 1:
            adj_f32 = adj.astype(jnp.float32)                # power chain stays in f32
            adj_pow = adj_f32
            for k in range(1, order_num):
                adj_pow = adj_pow * adj_f32                  # elementwise adj**(k+1)
                acc = acc + jnp.dot(adj_pow.astype(adj.dtype),
                                    xw_hi_ref[:, k * f_pad:(k + 1) * f_pad],
                                    preferred_element_type=jnp.float32)
        o_ref[...] += acc

    @pl.when(j == pl.num_programs(1) - 1)
    def _finalize():
        out = o_ref[...]
        if use_bias:
            out = out + b_ref[...]                           # (1, f_pad) broadcast
        o_ref[...] = jnp.maximum(out, 0.0)                   # act = ReLU


def graphical_conv2d_forward(x, adj, weights, bias=None, *, order_num,
                             use_bias=True, compute_dtype=jnp.float32,
                             tm=None, tn=None):
    """x: (N, D), adj: (N, N) or prepared (n_pad, n_pad), weights: (D, F, K), bias: (F,)."""
    N, D = x.shape
    F_out = weights.shape[1]
    K = order_num + 1
    assert weights.shape == (D, F_out, K)

    compute_dtype = jnp.dtype(compute_dtype)
    itemsize = compute_dtype.itemsize
    row_step = 16 if itemsize < 4 else 8                     # bf16 needs 16-row sublane packing
    f_pad = _round_up(F_out, 128)                            # lane-dense output columns

    # ---- adjacency: reuse a prepared (cast + padded) matrix if the caller provides one ----
    if order_num > 0:
        if (adj.ndim == 2 and adj.shape[0] == adj.shape[1] and adj.shape[0] >= N
                and adj.shape[0] % 128 == 0 and adj.dtype == compute_dtype):
            adj_p = adj
            n_pad = adj.shape[0]
        else:
            assert adj.shape == (N, N)
            n_pad = _round_up(max(N, 128), 128)
            # TODO(synk): for repeated calls, cache this via prepare_adjacency() (adj is static).
            adj_p = jnp.pad(adj.astype(compute_dtype), ((0, n_pad - N), (0, n_pad - N)))
    else:
        adj_p = None
        n_pad = _round_up(max(N, 128), 128)

    # ---- generation-aware VMEM budget ----
    cap = _vmem_capacity_bytes()
    if cap >= 100 * 1024 * 1024:                 # v5e / v6e: 128 MiB physical VMEM
        budget, limit_cap = 96 << 20, 112 << 20
    else:                                        # v7x: 64 MiB physical VMEM per TC
        budget, limit_cap = 40 << 20, 52 << 20

    tn_cands = [c for c in (2048, 1536, 1024, 768, 512, 384, 256, 128)
                if c <= n_pad and n_pad % c == 0] or [128]
    tm_cands = [c for c in (1024, 768, 512, 384, 256, 128, 64, 32, 16, 8)
                if c <= n_pad and n_pad % c == 0 and c % row_step == 0] or [row_step]

    def _snap(v, step, cands):
        v = max(step, (int(v) // step) * step)
        v = min(v, n_pad)
        while n_pad % v != 0 and v > step:
            v -= step
        return v if n_pad % v == 0 else cands[-1]

    if tm is not None:
        tm = _snap(tm, row_step, tm_cands)
    if tn is not None:
        tn = _snap(tn, 128, tn_cands)

    if tm is None or tn is None:
        best = None
        for tnc in ([tn] if tn is not None else tn_cands):
            for tmc in ([tm] if tm is not None else tm_cands):
                if _vmem_estimate(tmc, tnc, f_pad, order_num, itemsize, use_bias) <= budget:
                    if best is None or tmc * tnc > best[0]:
                        best = (tmc * tnc, tmc, tnc)
        if best is None:   # nothing fits the budget: fall back to the smallest tiles
            best = (0, tm if tm is not None else tm_cands[-1],
                    tn if tn is not None else tn_cands[-1])
        tm, tn = best[1], best[2]

    # ---- precompute xw = x @ W_k once (fused over k); the kernel never sees the D dim ----
    x32 = x.astype(jnp.float32)
    w_pad = jnp.pad(weights.astype(jnp.float32),
                    ((0, 0), (0, f_pad - F_out), (0, 0)))    # (D, f_pad, K)

    xw0 = jnp.pad(x32 @ w_pad[:, :, 0], ((0, n_pad - N), (0, 0)))   # (n_pad, f_pad) f32

    ins = [xw0]
    in_specs = [pl.BlockSpec((tm, f_pad), lambda i, j: (i, 0))]

    if order_num > 0:
        w_hi = jnp.transpose(w_pad[:, :, 1:], (0, 2, 1)).reshape(D, order_num * f_pad)
        xw_hi = jnp.pad(x32 @ w_hi, ((0, n_pad - N), (0, 0))).astype(compute_dtype)
        ins += [xw_hi, adj_p]
        in_specs += [
            pl.BlockSpec((tn, order_num * f_pad), lambda i, j: (j, 0)),   # xw column block
            pl.BlockSpec((tm, tn), lambda i, j: (i, j)),                  # adj block (streamed)
        ]

    if use_bias:
        b2d = jnp.pad(bias.astype(jnp.float32), (0, f_pad - F_out)).reshape(1, f_pad)
        ins.append(b2d)
        in_specs.append(pl.BlockSpec((1, f_pad), lambda i, j: (0, 0)))

    grid_rows = n_pad // tm
    grid_cols = (n_pad // tn) if order_num > 0 else 1

    est = _vmem_estimate(tm, tn, f_pad, order_num, itemsize, use_bias)
    vmem_limit = int(min(limit_cap, max(32 << 20, est + est // 3 + (8 << 20))))

    flops = 2 * order_num * n_pad * n_pad * f_pad + max(order_num - 1, 0) * n_pad * n_pad
    bytes_accessed = 2 * n_pad * f_pad * 4 + (f_pad * 4 if use_bias else 0)
    if order_num > 0:
        bytes_accessed += n_pad * n_pad * itemsize                         # adj (dominant)
        bytes_accessed += grid_rows * n_pad * order_num * f_pad * itemsize  # xw re-streamed

    kernel = functools.partial(gcn_kernel, order_num=order_num,
                               use_bias=use_bias, f_pad=f_pad)

    out_p = pl.pallas_call(
        kernel,
        out_shape=jax.ShapeDtypeStruct((n_pad, f_pad), jnp.float32),
        grid=(grid_rows, grid_cols),
        in_specs=in_specs,
        out_specs=pl.BlockSpec((tm, f_pad), lambda i, j: (i, 0)),
        compiler_params=pltpu.CompilerParams(
            dimension_semantics=("parallel", "arbitrary"),   # rows shard over v7x's 2 TCs
            vmem_limit_bytes=vmem_limit),
        cost_estimate=pl.CostEstimate(flops=int(flops), transcendentals=0,
                                      bytes_accessed=int(bytes_accessed)),
    )(*ins)

    return out_p[:N, :F_out]


def reference_forward_np(x, adj, weights, bias, *, order_num, use_bias=True):
    """float64 numpy reference mirroring the PyTorch forward exactly (precision-independent)."""
    x64 = np.asarray(x, dtype=np.float64)
    a64 = np.asarray(adj, dtype=np.float64)
    w64 = np.asarray(weights, dtype=np.float64)
    out = x64 @ w64[:, :, 0]
    for i in range(order_num):
        out = out + (a64 ** (i + 1)) @ x64 @ w64[:, :, i + 1]
    if use_bias:
        out = out + np.asarray(bias, dtype=np.float64)
    return np.maximum(out, 0.0)


if __name__ == "__main__":
    key = jax.random.PRNGKey(0)
    k_x, k_adj, k_w = jax.random.split(key, 3)

    # Small synthetic problem (big enough to exercise the 2-D pipelined grid).
    N = 256          # number of graph nodes
    D_in = 32        # input_dim  (features.shape[1])
    D_out = 16       # output_dim (y_train.shape[1])
    order_num = 2    # Chebyshev-like order
    K = order_num + 1

    x = jax.random.normal(k_x, (N, D_in), dtype=jnp.float32)
    # Symmetric-ish, sparse-ish adjacency with values in [0, 1).
    a = jax.random.uniform(k_adj, (N, N), dtype=jnp.float32)
    adj = (a + a.T) * 0.5
    adj = jnp.where(adj > 0.7, adj, 0.0)

    # Deterministic xavier_normal-style init for weights (D_in, D_out, K).
    fan_in = D_out * K
    fan_out = D_in * K
    std = (2.0 / (fan_in + fan_out)) ** 0.5
    weights = std * jax.random.normal(k_w, (D_in, D_out, K), dtype=jnp.float32)
    bias = jnp.zeros((D_out,), dtype=jnp.float32)   # nn.init.constant(bias, 0)

    ref = reference_forward_np(x, adj, weights, bias, order_num=order_num, use_bias=True)
    scale = float(np.max(np.abs(ref))) + 1e-6

    # f32 path with forced small tiles -> 4 (parallel rows) x 2 (arbitrary cols) grid.
    out_f32 = graphical_conv2d_forward(x, adj, weights, bias, order_num=order_num,
                                       use_bias=True, compute_dtype=jnp.float32,
                                       tm=64, tn=128)
    out_f32 = jax.block_until_ready(out_f32)
    assert out_f32.shape == (N, D_out)
    err = float(np.max(np.abs(np.asarray(out_f32, dtype=np.float64) - ref)))
    assert err <= 0.02 * scale + 0.02, f"f32 mismatch: err={err}, scale={scale}"

    # Auto-tiled f32 path (exercises the generation-aware VMEM-budgeted tile chooser).
    out_auto = graphical_conv2d_forward(x, adj, weights, bias, order_num=order_num,
                                        use_bias=True, compute_dtype=jnp.float32)
    out_auto = jax.block_until_ready(out_auto)
    err = float(np.max(np.abs(np.asarray(out_auto, dtype=np.float64) - ref)))
    assert err <= 0.02 * scale + 0.02, f"auto-tile mismatch: err={err}, scale={scale}"

    # bf16 adj/xw path using a pre-prepared (cached) adjacency -> skips per-call cast/pad.
    # NOTE: adj is quantized to bf16 before the elementwise power chain; the error
    # compounds roughly like adj**k for larger order_num (loose tolerance below).
    adj_bf16 = prepare_adjacency(adj, compute_dtype=jnp.bfloat16)
    out_bf16 = graphical_conv2d_forward(x, adj_bf16, weights, bias, order_num=order_num,
                                        use_bias=True, compute_dtype=jnp.bfloat16,
                                        tm=64, tn=128)
    out_bf16 = jax.block_until_ready(out_bf16)
    assert out_bf16.shape == (N, D_out)
    err = float(np.max(np.abs(np.asarray(out_bf16, dtype=np.float64) - ref)))
    assert err <= 0.05 * scale + 0.05, f"bf16 mismatch: err={err}, scale={scale}"

    print("KERNEL_OK")
</pallas_src>

<mosaic_0001>
module attributes {stable_mosaic.version = 11 : i64} {
  func.func @gcn_kernel(%arg0: i32, %arg1: i32, %arg2: memref<64x128xf32, #tpu.memory_space<vmem>>, %arg3: memref<128x256xf32, #tpu.memory_space<vmem>>, %arg4: memref<64x128xf32, #tpu.memory_space<vmem>>, %arg5: memref<1x128xf32, #tpu.memory_space<vmem>>, %arg6: memref<64x128xf32, #tpu.memory_space<vmem>>) attributes {dimension_semantics = [#tpu.dimension_semantics<parallel>, #tpu.dimension_semantics<arbitrary>], iteration_bounds = array<i64: 4, 2>, scalar_prefetch = 0 : i64, scratch_operands = 0 : i64, tpu.core_type = #tpu.core_type<tc>, window_params = [{transform_indices = @transform_0, window_bounds = array<i64: 64, 128>}, {transform_indices = @transform_1, window_bounds = array<i64: 128, 256>}, {transform_indices = @transform_2, window_bounds = array<i64: 64, 128>}, {pipeline_mode = #tpu.pipeline_mode<synchronous>, transform_indices = @transform_3, window_bounds = array<i64: 1, 128>}, {transform_indices = @transform_4, window_bounds = array<i64: 64, 128>}]} {
    %c0_i32 = arith.constant 0 : i32
    %0 = arith.cmpi eq, %arg1, %c0_i32 : i32
    %1 = arith.extui %0 : i1 to i32
    %c0_i32_0 = arith.constant 0 : i32
    %2 = arith.cmpi ne, %1, %c0_i32_0 : i32
    scf.if %2 {
      %c0_11 = arith.constant 0 : index
      %c0_12 = arith.constant 0 : index
      %16 = vector.load %arg2[%c0_11, %c0_12] : memref<64x128xf32, #tpu.memory_space<vmem>>, vector<64x128xf32>
      %c0_13 = arith.constant 0 : index
      %c0_14 = arith.constant 0 : index
      %17 = vector.load %arg6[%c0_13, %c0_14] : memref<64x128xf32, #tpu.memory_space<vmem>>, vector<64x128xf32>
      tpu.vector_store %arg6[%c0_13, %c0_14], %16 {strides = array<i32>} : memref<64x128xf32, #tpu.memory_space<vmem>>, vector<64x128xf32>,
    } else {
    }
    %c0 = arith.constant 0 : index
    %c0_1 = arith.constant 0 : index
    %3 = vector.load %arg4[%c0, %c0_1] : memref<64x128xf32, #tpu.memory_space<vmem>>, vector<64x128xf32>
    %c0_2 = arith.constant 0 : index
    %c0_3 = arith.constant 0 : index
    %4 = vector.load %arg3[%c0_2, %c0_3] : memref<128x256xf32, #tpu.memory_space<vmem>>, vector<128x128xf32>
    %cst = arith.constant dense<0.000000e+00> : vector<64x128xf32>
    %5 = tpu.matmul %3, %4, %cst {dimension_numbers = #tpu.dot_dimension_numbers<[1], [0], [0], [1], [0, 0, 1, 1], [], []>} : vector<64x128xf32>, vector<128x128xf32>, vector<64x128xf32> -> vector<64x128xf32>
    %6 = arith.mulf %3, %3 : vector<64x128xf32>
    %c0_4 = arith.constant 0 : index
    %c128 = arith.constant 128 : index
    %7 = vector.load %arg3[%c0_4, %c128] : memref<128x256xf32, #tpu.memory_space<vmem>>, vector<128x128xf32>
    %cst_5 = arith.constant dense<0.000000e+00> : vector<64x128xf32>
    %8 = tpu.matmul %6, %7, %cst_5 {dimension_numbers = #tpu.dot_dimension_numbers<[1], [0], [0], [1], [0, 0, 1, 1], [], []>} : vector<64x128xf32>, vector<128x128xf32>, vector<64x128xf32> -> vector<64x128xf32>
    %9 = arith.addf %5, %8 : vector<64x128xf32>
    %c0_6 = arith.constant 0 : index
    %c0_7 = arith.constant 0 : index
    %10 = vector.load %arg6[%c0_6, %c0_7] : memref<64x128xf32, #tpu.memory_space<vmem>>, vector<64x128xf32>
    %11 = arith.addf %10, %9 : vector<64x128xf32>
    %c0_8 = arith.constant 0 : index
    %c0_9 = arith.constant 0 : index
    %12 = vector.load %arg6[%c0_8, %c0_9] : memref<64x128xf32, #tpu.memory_space<vmem>>, vector<64x128xf32>
    tpu.vector_store %arg6[%c0_8, %c0_9], %11 {strides = array<i32>} : memref<64x128xf32, #tpu.memory_space<vmem>>, vector<64x128xf32>,
    %c1_i32 = arith.constant 1 : i32
    %13 = arith.cmpi eq, %arg1, %c1_i32 : i32
    %14 = arith.extui %13 : i1 to i32
    %c0_i32_10 = arith.constant 0 : i32
    %15 = arith.cmpi ne, %14, %c0_i32_10 : i32
    scf.if %15 {
      %c0_11 = arith.constant 0 : index
      %c0_12 = arith.constant 0 : index
      %16 = vector.load %arg6[%c0_11, %c0_12] : memref<64x128xf32, #tpu.memory_space<vmem>>, vector<64x128xf32>
      %c0_13 = arith.constant 0 : index
      %c0_14 = arith.constant 0 : index
      %17 = vector.load %arg5[%c0_13, %c0_14] : memref<1x128xf32, #tpu.memory_space<vmem>>, vector<1x128xf32>
      %18 = vector.broadcast %17 : vector<1x128xf32> to vector<64x128xf32>
      %19 = arith.addf %16, %18 : vector<64x128xf32>
      %cst_15 = arith.constant 0.000000e+00 : f32
      %20 = vector.broadcast %cst_15 : f32 to vector<64x128xf32>
      %21 = arith.maximumf %19, %20 : vector<64x128xf32>
      %c0_16 = arith.constant 0 : index
      %c0_17 = arith.constant 0 : index
      %22 = vector.load %arg6[%c0_16, %c0_17] : memref<64x128xf32, #tpu.memory_space<vmem>>, vector<64x128xf32>
      tpu.vector_store %arg6[%c0_16, %c0_17], %21 {strides = array<i32>} : memref<64x128xf32, #tpu.memory_space<vmem>>, vector<64x128xf32>,
    } else {
    }
    return
  }
  func.func @transform_0(%arg0: i32, %arg1: i32) -> (i32, i32) {
    %c0_i32 = arith.constant 0 : i32
    %c0_i32_0 = arith.constant 0 : i32
    return %arg0, %c0_i32 : i32, i32
  }
  func.func @transform_1(%arg0: i32, %arg1: i32) -> (i32, i32) {
    %c0_i32 = arith.constant 0 : i32
    %c0_i32_0 = arith.constant 0 : i32
    return %arg1, %c0_i32 : i32, i32
  }
  func.func @transform_2(%arg0: i32, %arg1: i32) -> (i32, i32) {
    %c0_i32 = arith.constant 0 : i32
    return %arg0, %arg1 : i32, i32
  }
  func.func @transform_3(%arg0: i32, %arg1: i32) -> (i32, i32) {
    %c0_i32 = arith.constant 0 : i32
    %c0_i32_0 = arith.constant 0 : i32
    %c0_i32_1 = arith.constant 0 : i32
    return %c0_i32, %c0_i32_0 : i32, i32
  }
  func.func @transform_4(%arg0: i32, %arg1: i32) -> (i32, i32) {
    %c0_i32 = arith.constant 0 : i32
    %c0_i32_0 = arith.constant 0 : i32
    return %arg0, %c0_i32 : i32, i32
  }
}

</mosaic_0001>

<llo_original>
// kernel: tpu_custom_call.1
$region0: #{tpu_custom_call.1}
  #allocation0 [shape = 'u32[]', space=smem, size = 0x4, offset = 0x4, fixed_abs, tag = 'smem constant byte address 0x4 - core index']
  #allocation1 [shape = 'u32[72,128]{1,0:T(1,128)}', space=vmem, size = 0x9000, scoped, tag = 'internal scratch']
  %s0 = inlined_call_operand.hbm [shape: f32[256,128], index: 0, kind: input, shape index: {}]
  %s1 = inlined_call_operand.hbm [shape: f32[256,256], index: 1, kind: input, shape index: {}]
  %s2 = inlined_call_operand.hbm [shape: f32[256,256], index: 2, kind: input, shape index: {}]
  %s3 = inlined_call_operand.vmem [shape: f32[1,128], index: 3, kind: input, shape index: {}]
  %s4 = inlined_call_operand.hbm [shape: f32[256,128], index: 4, kind: output, shape index: {}]
  %s5 = sld [smem:[#allocation0]]
  $region69: #{tpu_custom_call.1} parent=0
    _
  %s7 = ssub.s32 1, %s5
  %s8 = scalar_select 0, %s7, %s5
  $region1: #{tpu_custom_call.1} parent=0
    #allocation2 [shape = 'u8[65536]{0}', space=vmem, size = 0x10000, scoped, tag = 'input window, operand 0']
    #allocation3 [shape = 's32[2]{0}', space=sflag, size = 0x8, scoped, tag = 'scoped memory for tpu_custom_call.1']
    #allocation4 [shape = 's32[2]{0}', space=sflag, size = 0x8, scoped, tag = 'scoped memory for tpu_custom_call.1']
    #allocation5 [shape = 'u8[262144]{0}', space=vmem, size = 0x40000, scoped, tag = 'input window, operand 1']
    #allocation6 [shape = 's32[2]{0}', space=sflag, size = 0x8, scoped, tag = 'scoped memory for tpu_custom_call.1']
    #allocation7 [shape = 'u8[65536]{0}', space=vmem, size = 0x10000, scoped, tag = 'input window, operand 2']
    #allocation8 [shape = 'u8[65536]{0}', space=vmem, size = 0x10000, scoped, tag = 'output window, operand 0']
    %9 = vsyncpa [#allocation3], 0
    %s10 = scalar_lea.sflag [#allocation3], 1
    %11 = vsyncpa %s10, 0
    %12 = vsyncpa [#allocation6], 0
    %s13 = scalar_lea.sflag [#allocation6], 1
    %14 = vsyncpa %s13, 0
    %15 = vsyncpa [#allocation4], 0
    %s16 = scalar_lea.sflag [#allocation4], 1
    %17 = vsyncpa %s16, 0
    loop: start=0, step=1, limit=10
    $region2: #{tpu_custom_call.1} parent=1 // loop_pre_header
      _
    $region3: #{tpu_custom_call.1} parent=1 // loop_header
      %s19 = sphi 0, %s23
      %p20 = scmp.ge.s32.totalorder %s19, 10
      %s26 = sphi 0, %s38
      %s27 = sphi 0, %s34
      %s28 = sphi 0, %s26
      %s29 = sphi 0, %s27
      %s30 = sphi 0, %s28
      %s31 = sphi 0, %s29
      %s41 = sphi 0, %s43
      %s44 = sphi 0, %s41
      %s45 = sphi 0, %s44
      %s61 = sphi 0, %s45
      %s67 = sphi 0, %s69
      %s70 = sphi 0, %s67
      %s71 = sphi 0, %s70
      %s87 = sphi 0, %s71
      %s95 = sphi 0, %s97
      %s98 = sphi 0, %s95
      %s99 = sphi 0, %s98
      %s115 = sphi 0, %s99
      %s119 = sphi 0, %s119
      %s121 = sphi 0, %s119
      %s122 = sphi 0, %s121
      %s136 = sphi 0, %s122
      %s142 = sphi 0, %s144
      %s145 = sphi 0, %s142
      %s146 = sphi 0, %s145
      %s162 = sphi 0, %s146
    $region4: #{tpu_custom_call.1} parent=1 // loop_header_branch
      %22 = sbr.rel (%p20) target = $region8
    $region5: #{tpu_custom_call.1} parent=1 // loop_body
      %s24 = ssub.s32 %s19, 1
      %s25 = ssub.s32 %s19, 2
      %s32 = sadd.s32 1, %s27
      %p33 = scmp.ge.s32.totalorder %s32, 2
      %s34 = scalar_select %p33, 0, %s32
      %s35 = sadd.s32 1, %s26
      %s36 = scalar_select %p33, %s35, %s26
      %p37 = scmp.ge.s32.totalorder %s36, 4
      %s38 = scalar_select %p37, 0, %s36
      %s39 = ssub.s32 %s26, %s38
      %p40 = scmp.eq.s32.totalorder %s39, 0
      %s42 = sadd.s32 %s41, 1
      %s43 = scalar_select %p40, %s41, %s42
      %p46 = pneg %p40
      %p47 = scmp.eq.s32.totalorder %s19, 7
      %p48 = por %p46, %p47
      %p49 = scmp.ne.s32.totalorder %s41, %s44
      %p50 = scmp.eq.s32.totalorder %s19, 0
      %p51 = por %p49, %p50
      %p52 = scmp.ne.s32.totalorder %s41, %s44
      %p53 = scmp.eq.s32.totalorder %s24, 7
      %p54 = por %p52, %p53
      %p55 = scmp.ne.s32.totalorder %s44, %s45
      %p56 = scmp.eq.s32.totalorder %s24, 0
      %p57 = por %p55, %p56
      %p58 = scmp.ne.s32.totalorder %s44, %s45
      %p59 = scmp.eq.s32.totalorder %s25, 7
      %p60 = por %p58, %p59
      %p62 = scmp.ne.s32.totalorder %s45, %s61
      %p63 = scmp.eq.s32.totalorder %s25, 0
      %p64 = por %p62, %p63
      %s65 = ssub.s32 %s27, %s34
      %p66 = scmp.eq.s32.totalorder %s65, 0
      %s68 = sadd.s32 %s67, 1
      %s69 = scalar_select %p66, %s67, %s68
      %p72 = pneg %p66
      %p73 = scmp.eq.s32.totalorder %s19, 7
      %p74 = por %p72, %p73
      %p75 = scmp.ne.s32.totalorder %s67, %s70
      %p76 = scmp.eq.s32.totalorder %s19, 0
      %p77 = por %p75, %p76
      %p78 = scmp.ne.s32.totalorder %s67, %s70
      %p79 = scmp.eq.s32.totalorder %s24, 7
      %p80 = por %p78, %p79
      %p81 = scmp.ne.s32.totalorder %s70, %s71
      %p82 = scmp.eq.s32.totalorder %s24, 0
      %p83 = por %p81, %p82
      %p84 = scmp.ne.s32.totalorder %s70, %s71
      %p85 = scmp.eq.s32.totalorder %s25, 7
      %p86 = por %p84, %p85
      %p88 = scmp.ne.s32.totalorder %s71, %s87
      %p89 = scmp.eq.s32.totalorder %s25, 0
      %p90 = por %p88, %p89
      %s91 = ssub.s32 %s26, %s38
      %s92 = ssub.s32 %s27, %s34
      %s93 = sor.u32 %s91, %s92
      %p94 = scmp.eq.s32.totalorder %s93, 0
      %s96 = sadd.s32 %s95, 1
      %s97 = scalar_select %p94, %s95, %s96
      %p100 = pneg %p94
      %p101 = scmp.eq.s32.totalorder %s19, 7
      %p102 = por %p100, %p101
      %p103 = scmp.ne.s32.totalorder %s95, %s98
      %p104 = scmp.eq.s32.totalorder %s19, 0
      %p105 = por %p103, %p104
      %p106 = scmp.ne.s32.totalorder %s95, %s98
      %p107 = scmp.eq.s32.totalorder %s24, 7
      %p108 = por %p106, %p107
      %p109 = scmp.ne.s32.totalorder %s98, %s99
      %p110 = scmp.eq.s32.totalorder %s24, 0
      %p111 = por %p109, %p110
      %p112 = scmp.ne.s32.totalorder %s98, %s99
      %p113 = scmp.eq.s32.totalorder %s25, 7
      %p114 = por %p112, %p113
      %p116 = scmp.ne.s32.totalorder %s99, %s115
      %p117 = scmp.eq.s32.totalorder %s25, 0
      %p118 = por %p116, %p117
      %s120 = sadd.s32 %s119, 1
      %p123 = scmp.eq.s32.totalorder %s19, 7
      %p124 = scmp.ne.s32.totalorder %s119, %s121
      %p125 = scmp.eq.s32.totalorder %s19, 0
      %p126 = por %p124, %p125
      %p127 = scmp.ne.s32.totalorder %s119, %s121
      %p128 = scmp.eq.s32.totalorder %s24, 7
      %p129 = por %p127, %p128
      %p130 = scmp.ne.s32.totalorder %s121, %s122
      %p131 = scmp.eq.s32.totalorder %s24, 0
      %p132 = por %p130, %p131
      %p133 = scmp.ne.s32.totalorder %s121, %s122
      %p134 = scmp.eq.s32.totalorder %s25, 7
      %p135 = por %p133, %p134
      %p137 = scmp.ne.s32.totalorder %s122, %s136
      %p138 = scmp.eq.s32.totalorder %s25, 0
      %p139 = por %p137, %p138
      %s140 = ssub.s32 %s26, %s38
      %p141 = scmp.eq.s32.totalorder %s140, 0
      %s143 = sadd.s32 %s142, 1
      %s144 = scalar_select %p141, %s142, %s143
      %p147 = pneg %p141
      %p148 = scmp.eq.s32.totalorder %s19, 7
      %p149 = por %p147, %p148
      %p150 = scmp.ne.s32.totalorder %s142, %s145
      %p151 = scmp.eq.s32.totalorder %s19, 0
      %p152 = por %p150, %p151
      %p153 = scmp.ne.s32.totalorder %s142, %s145
      %p154 = scmp.eq.s32.totalorder %s24, 7
      %p155 = por %p153, %p154
      %p156 = scmp.ne.s32.totalorder %s145, %s146
      %p157 = scmp.eq.s32.totalorder %s24, 0
      %p158 = por %p156, %p157
      %p159 = scmp.ne.s32.totalorder %s145, %s146
      %p160 = scmp.eq.s32.totalorder %s25, 7
      %p161 = por %p159, %p160
      %p163 = scmp.ne.s32.totalorder %s146, %s162
      %p164 = scmp.eq.s32.totalorder %s25, 0
      %p165 = por %p163, %p164
      %p166 = scmp.le.s32.totalorder 1, %s19
      %p167 = scmp.lt.s32.totalorder %s19, 9
      %p168 = pnand %p166, %p167
      %p169 = pneg %p168
      // Predicated region
      $region9: #{tpu_custom_call.1} parent=5 // pred_check
        _
      $region10: #{tpu_custom_call.1} parent=5 // pred_check_branch
        %171 = sbr.rel (%p168) target = $region12
      $region11: #{tpu_custom_call.1} parent=5 // pred_region
        %s172 = ssub.s32 %s19, 1
        // Predicated region
        $region13: #{tpu_custom_call.1} parent=11 // pred_check
          %p173 = pneg %p132
        $region14: #{tpu_custom_call.1} parent=11 // pred_check_branch
          %175 = sbr.rel (%p173) target = $region16
        $region15: #{tpu_custom_call.1} parent=11 // pred_region
          _
        $region16: #{tpu_custom_call.1} parent=11 // pred_fallthru
          _
      $region12: #{tpu_custom_call.1} parent=5 // pred_fallthru
        _
      %p176 = scmp.lt.s32.totalorder %s19, 8
      // Predicated region
      $region17: #{tpu_custom_call.1} parent=5 // pred_check
        %p177 = pneg %p176
      $region18: #{tpu_custom_call.1} parent=5 // pred_check_branch
        %179 = sbr.rel (%p177) target = $region20
      $region19: #{tpu_custom_call.1} parent=5 // pred_region
        // Predicated region
        $region21: #{tpu_custom_call.1} parent=19 // pred_check
          %p180 = pneg %p51
        $region22: #{tpu_custom_call.1} parent=19 // pred_check_branch
          %182 = sbr.rel (%p180) target = $region24
        $region23: #{tpu_custom_call.1} parent=19 // pred_region
          %s183 = sand.u32 %s41, 1
          %s184 = scalar_lea.sflag [#allocation3], %s183
          %s185 = sand.u32 %s41, 1
          %s186 = smul.addr %s185, 64
          %s187 = scalar_lea.vmem [#allocation2], %s186
          %s188 = smul.u32 8, %s26
          %190 = vsyncadd %s184, 0
          %s191 = smul.addr %s188, 8
          %s192 = scalar_lea.hbm %s0, %s191
          %s193 = sshll.u32 %s192, 4
          %s194 = int_to_ptr.hbm [resolvable:$true] %s193
          %s195 = sshll.u32 %s187, 4
          %s196 = int_to_ptr.vmem [resolvable:$true] %s195
          %201 = dma.hbm_to_vmem [thread:$0]  %s194, 1024, %s196, %s184, 128, 128, 8
        $region24: #{tpu_custom_call.1} parent=19 // pred_fallthru
          _
        // Predicated region
        $region25: #{tpu_custom_call.1} parent=19 // pred_check
          %p202 = pneg %p77
        $region26: #{tpu_custom_call.1} parent=19 // pred_check_branch
          %204 = sbr.rel (%p202) target = $region28
        $region27: #{tpu_custom_call.1} parent=19 // pred_region
          %s205 = sand.u32 %s19, 1
          %s206 = scalar_lea.sflag [#allocation6], %s205
          %s207 = sand.u32 %s67, 1
          %s208 = smul.addr %s207, 256
          %s209 = scalar_lea.vmem [#allocation5], %s208
          %s210 = smul.u32 16, %s27
          %212 = vsyncadd %s206, 0
          %s213 = smul.addr %s210, 2
          %s214 = smul.addr %s213, 8
          %s215 = scalar_lea.hbm %s1, %s214
          %s216 = sshll.u32 %s215, 4
          %s217 = int_to_ptr.hbm [resolvable:$true] %s216
          %s218 = sshll.u32 %s209, 4
          %s219 = int_to_ptr.vmem [resolvable:$true] %s218
          %224 = dma.hbm_to_vmem [thread:$0]  %s217, 4096, %s219, %s206, 256, 256, 16
        $region28: #{tpu_custom_call.1} parent=19 // pred_fallthru
          _
        // Predicated region
        $region29: #{tpu_custom_call.1} parent=19 // pred_check
          %p225 = pneg %p105
        $region30: #{tpu_custom_call.1} parent=19 // pred_check_branch
          %227 = sbr.rel (%p225) target = $region32
        $region31: #{tpu_custom_call.1} parent=19 // pred_region
          %s228 = sand.u32 %s19, 1
          %s229 = scalar_lea.sflag [#allocation6], %s228
          %s230 = sand.u32 %s95, 1
          %s231 = smul.addr %s230, 64
          %s232 = scalar_lea.vmem [#allocation7], %s231
          %s233 = smul.u32 8, %s26
          %235 = vsyncadd %s229, 0
          %s236 = smul.addr %s233, 2
          %s237 = sadd.s32 %s27, %s236
          %s238 = smul.addr %s237, 8
          %s239 = scalar_lea.hbm %s2, %s238
          %s240 = sshll.u32 %s239, 4
          %s241 = int_to_ptr.hbm [resolvable:$true] %s240
          %s242 = sshll.u32 %s232, 4
          %s243 = int_to_ptr.vmem [resolvable:$true] %s242
          %248 = dma.hbm_to_vmem [thread:$0]  %s241, 1024, %s243, %s229, 256, 128, 8
        $region32: #{tpu_custom_call.1} parent=19 // pred_fallthru
          _
      $region20: #{tpu_custom_call.1} parent=5 // pred_fallthru
        _
      %p249 = scmp.le.s32.totalorder 1, %s19
      %p250 = scmp.lt.s32.totalorder %s19, 9
      %p251 = pnand %p249, %p250
      %p252 = pneg %p251
      // Predicated region
      $region33: #{tpu_custom_call.1} parent=5 // pred_check
        _
      $region34: #{tpu_custom_call.1} parent=5 // pred_check_branch
        %254 = sbr.rel (%p251) target = $region36
      $region35: #{tpu_custom_call.1} parent=5 // pred_region
        %s255 = ssub.s32 %s19, 1
        %s256 = sand.u32 %s44, 1
        %s257 = scalar_lea.sflag [#allocation3], %s256
        %s258 = sand.u32 %s44, 1
        %s259 = smul.addr %s258, 64
        %s260 = scalar_lea.vmem [#allocation2], %s259
        // Predicated region
        $region37: #{tpu_custom_call.1} parent=35 // pred_check
          %p261 = pneg %p57
        $region38: #{tpu_custom_call.1} parent=35 // pred_check_branch
          %263 = sbr.rel (%p261) target = $region40
        $region39: #{tpu_custom_call.1} parent=35 // pred_region
          %265 = dma.done %s257, 1024
        $region40: #{tpu_custom_call.1} parent=35 // pred_fallthru
          _
        %s266 = sand.u32 %s24, 1
        %s267 = scalar_lea.sflag [#allocation6], %s266
        %s268 = sand.u32 %s70, 1
        %s269 = smul.addr %s268, 256
        %s270 = scalar_lea.vmem [#allocation5], %s269
        // Predicated region
        $region41: #{tpu_custom_call.1} parent=35 // pred_check
          %p271 = pneg %p83
        $region42: #{tpu_custom_call.1} parent=35 // pred_check_branch
          %273 = sbr.rel (%p271) target = $region44
        $region43: #{tpu_custom_call.1} parent=35 // pred_region
          %275 = dma.done %s267, 4096
        $region44: #{tpu_custom_call.1} parent=35 // pred_fallthru
          _
        %s276 = sand.u32 %s24, 1
        %s277 = scalar_lea.sflag [#allocation6], %s276
        %s278 = sand.u32 %s98, 1
        %s279 = smul.addr %s278, 64
        %s280 = scalar_lea.vmem [#allocation7], %s279
        // Predicated region
        $region45: #{tpu_custom_call.1} parent=35 // pred_check
          %p281 = pneg %p111
        $region46: #{tpu_custom_call.1} parent=35 // pred_check_branch
          %283 = sbr.rel (%p281) target = $region48
        $region47: #{tpu_custom_call.1} parent=35 // pred_region
          %285 = dma.done %s277, 1024
        $region48: #{tpu_custom_call.1} parent=35 // pred_fallthru
          _
        %s286 = sand.u32 %s44, 1
        %s287 = scalar_lea.sflag [#allocation3], %s286
        %s288 = sand.u32 %s44, 1
        %s289 = smul.addr %s288, 64
        %s290 = scalar_lea.vmem [#allocation2], %s289
        %p291 = pneg %p57
        %p292 = pneg %p54
        %s293 = sand.u32 %s24, 1
        %s294 = scalar_lea.sflag [#allocation6], %s293
        %s295 = sand.u32 %s70, 1
        %s296 = smul.addr %s295, 256
        %s297 = scalar_lea.vmem [#allocation5], %s296
        %p298 = pneg %p83
        %p299 = pneg %p80
        %s300 = sand.u32 %s24, 1
        %s301 = scalar_lea.sflag [#allocation6], %s300
        %s302 = sand.u32 %s98, 1
        %s303 = smul.addr %s302, 64
        %s304 = scalar_lea.vmem [#allocation7], %s303
        %p305 = pneg %p111
        %p306 = pneg %p108
        %p307 = pneg %p132
        %p308 = pneg %p129
        %p309 = pneg %p158
        %p310 = pneg %p155
        %s311 = sand.u32 %s145, 1
        %s312 = scalar_lea.sflag [#allocation4], %s311
        %s313 = sand.u32 %s145, 1
        %s314 = smul.addr %s313, 64
        %s315 = scalar_lea.vmem [#allocation8], %s314
        %s316 = smul.u32 8, %s28
        %s317 = smul.u32 16, %s29
        %s318 = smul.u32 8, %s28
        %s319 = smul.u32 8, %s28
        %p320 = scmp.eq.s32.totalorder %s29, 0
        // Predicated region
        $region49: #{tpu_custom_call.1} parent=35 // pred_check
          %p321 = pneg %p320
        $region50: #{tpu_custom_call.1} parent=35 // pred_check_branch
          %323 = sbr.rel (%p321) target = $region52
        $region51: #{tpu_custom_call.1} parent=35 // pred_region
          %v324 = vld [vmem:[%s260] sm:$0xff]
          %v325 = vld [vmem:[%s260 + $0x8] sm:$0xff]
          %v326 = vld [vmem:[%s260 + $0x10] sm:$0xff]
          %v327 = vld [vmem:[%s260 + $0x18] sm:$0xff]
          %v328 = vld [vmem:[%s260 + $0x20] sm:$0xff]
          %v329 = vld [vmem:[%s260 + $0x28] sm:$0xff]
          %v330 = vld [vmem:[%s260 + $0x30] sm:$0xff]
          %v331 = vld [vmem:[%s260 + $0x38] sm:$0xff]
          %332 = vst [vmem:[%s315] sm:$0xff] %v324
          %333 = vst [vmem:[%s315 + $0x8] sm:$0xff] %v325
          %334 = vst [vmem:[%s315 + $0x10] sm:$0xff] %v326
          %335 = vst [vmem:[%s315 + $0x18] sm:$0xff] %v327
          %336 = vst [vmem:[%s315 + $0x20] sm:$0xff] %v328
          %337 = vst [vmem:[%s315 + $0x28] sm:$0xff] %v329
          %338 = vst [vmem:[%s315 + $0x30] sm:$0xff] %v330
          %339 = vst [vmem:[%s315 + $0x38] sm:$0xff] %v331
        $region52: #{tpu_custom_call.1} parent=35 // pred_fallthru
          _
        %v340 = vld [vmem:[%s280] sm:$0xff]
        %v341 = vld [vmem:[%s280 + $0x8] sm:$0xff]
        %v342 = vld [vmem:[%s280 + $0x10] sm:$0xff]
        %v343 = vld [vmem:[%s280 + $0x18] sm:$0xff]
        %v344 = vld [vmem:[%s280 + $0x20] sm:$0xff]
        %v345 = vld [vmem:[%s280 + $0x28] sm:$0xff]
        %v346 = vld [vmem:[%s280 + $0x30] sm:$0xff]
        %v347 = vld [vmem:[%s280 + $0x38] sm:$0xff]
        %v348 = vld [vmem:[%s270] sm:$0xff]
        %v349 = vld [vmem:[%s270 + $0x10] sm:$0xff]
        %v350 = vld [vmem:[%s270 + $0x20] sm:$0xff]
        %v351 = vld [vmem:[%s270 + $0x30] sm:$0xff]
        %v352 = vld [vmem:[%s270 + $0x40] sm:$0xff]
        %v353 = vld [vmem:[%s270 + $0x50] sm:$0xff]
        %v354 = vld [vmem:[%s270 + $0x60] sm:$0xff]
        %v355 = vld [vmem:[%s270 + $0x70] sm:$0xff]
        %v356 = vld [vmem:[%s270 + $0x80] sm:$0xff]
        %v357 = vld [vmem:[%s270 + $0x90] sm:$0xff]
        %v358 = vld [vmem:[%s270 + $0xa0] sm:$0xff]
        %v359 = vld [vmem:[%s270 + $0xb0] sm:$0xff]
        %v360 = vld [vmem:[%s270 + $0xc0] sm:$0xff]
        %v361 = vld [vmem:[%s270 + $0xd0] sm:$0xff]
        %v362 = vld [vmem:[%s270 + $0xe0] sm:$0xff]
        %v363 = vld [vmem:[%s270 + $0xf0] sm:$0xff]
        %v364 = vmul.f32 %v340, %v340
        %v365 = vmul.f32 %v341, %v341
        %v366 = vmul.f32 %v342, %v342
        %v367 = vmul.f32 %v343, %v343
        %v368 = vmul.f32 %v344, %v344
        %v369 = vmul.f32 %v345, %v345
        %v370 = vmul.f32 %v346, %v346
        %v371 = vmul.f32 %v347, %v347
        %v372 = vld [vmem:[%s270 + $0x8] sm:$0xff]
        %v373 = vld [vmem:[%s270 + $0x18] sm:$0xff]
        %v374 = vld [vmem:[%s270 + $0x28] sm:$0xff]
        %v375 = vld [vmem:[%s270 + $0x38] sm:$0xff]
        %v376 = vld [vmem:[%s270 + $0x48] sm:$0xff]
        %v377 = vld [vmem:[%s270 + $0x58] sm:$0xff]
        %v378 = vld [vmem:[%s270 + $0x68] sm:$0xff]
        %v379 = vld [vmem:[%s270 + $0x78] sm:$0xff]
        %v380 = vld [vmem:[%s270 + $0x88] sm:$0xff]
        %v381 = vld [vmem:[%s270 + $0x98] sm:$0xff]
        %v382 = vld [vmem:[%s270 + $0xa8] sm:$0xff]
        %v383 = vld [vmem:[%s270 + $0xb8] sm:$0xff]
        %v384 = vld [vmem:[%s270 + $0xc8] sm:$0xff]
        %v385 = vld [vmem:[%s270 + $0xd8] sm:$0xff]
        %v386 = vld [vmem:[%s270 + $0xe8] sm:$0xff]
        %v387 = vld [vmem:[%s270 + $0xf8] sm:$0xff]
        %388 = vmatpush.msra.mxu0 %v387
        %389 = vmatpush.msra.mxu0 %v386
        %390 = vmatpush.msra.mxu0 %v385
        %391 = vmatpush.msra.mxu0 %v384
        %392 = vmatpush.msra.mxu0 %v383
        %393 = vmatpush.msra.mxu0 %v382
        %394 = vmatpush.msra.mxu0 %v381
        %395 = vmatpush.msra.mxu0 %v380
        %396 = vmatpush.msra.mxu0 %v379
        %397 = vmatpush.msra.mxu0 %v378
        %398 = vmatpush.msra.mxu0 %v377
        %399 = vmatpush.msra.mxu0 %v376
        %400 = vmatpush.msra.mxu0 %v375
        %401 = vmatpush.msra.mxu0 %v374
        %402 = vmatpush.msra.mxu0 %v373
        %403 = vmatpush.msra.mxu0 %v372
        %404 = vmatmul.f32.gmra.mxu0 %v364
        %v405 = vpop.f32.mrf.mxu0
        %v406 = vadd.f32 0.0, %v405
        %407 = vmatmul.f32.gmra.mxu0 %v365
        %v408 = vpop.f32.mrf.mxu0
        %v409 = vadd.f32 0.0, %v408
        %410 = vmatmul.f32.gmra.mxu0 %v366
        %v411 = vpop.f32.mrf.mxu0
        %v412 = vadd.f32 0.0, %v411
        %413 = vmatmul.f32.gmra.mxu0 %v367
        %v414 = vpop.f32.mrf.mxu0
        %v415 = vadd.f32 0.0, %v414
        %416 = vmatmul.f32.gmra.mxu0 %v368
        %v417 = vpop.f32.mrf.mxu0
        %v418 = vadd.f32 0.0, %v417
        %419 = vmatmul.f32.gmra.mxu0 %v369
        %v420 = vpop.f32.mrf.mxu0
        %v421 = vadd.f32 0.0, %v420
        %422 = vmatmul.f32.gmra.mxu0 %v370
        %v423 = vpop.f32.mrf.mxu0
        %v424 = vadd.f32 0.0, %v423
        %425 = vmatmul.f32.gmra.mxu0 %v371
        %v426 = vpop.f32.mrf.mxu0
        %v427 = vadd.f32 0.0, %v426
        %428 = vdwg.mxu0
        %429 = vmatpush.msra.mxu0 %v363
        %430 = vmatpush.msra.mxu0 %v362
        %431 = vmatpush.msra.mxu0 %v361
        %432 = vmatpush.msra.mxu0 %v360
        %433 = vmatpush.msra.mxu0 %v359
        %434 = vmatpush.msra.mxu0 %v358
        %435 = vmatpush.msra.mxu0 %v357
        %436 = vmatpush.msra.mxu0 %v356
        %437 = vmatpush.msra.mxu0 %v355
        %438 = vmatpush.msra.mxu0 %v354
        %439 = vmatpush.msra.mxu0 %v353
        %440 = vmatpush.msra.mxu0 %v352
        %441 = vmatpush.msra.mxu0 %v351
        %442 = vmatpush.msra.mxu0 %v350
        %443 = vmatpush.msra.mxu0 %v349
        %444 = vmatpush.msra.mxu0 %v348
        %445 = vmatmul.f32.gmra.mxu0 %v340
        %v446 = vpop.f32.mrf.mxu0
        %v447 = vadd.f32 %v406, %v446
        %448 = vmatmul.f32.gmra.mxu0 %v341
        %v449 = vpop.f32.mrf.mxu0
        %v450 = vadd.f32 %v409, %v449
        %451 = vmatmul.f32.gmra.mxu0 %v342
        %v452 = vpop.f32.mrf.mxu0
        %v453 = vadd.f32 %v412, %v452
        %454 = vmatmul.f32.gmra.mxu0 %v343
        %v455 = vpop.f32.mrf.mxu0
        %v456 = vadd.f32 %v415, %v455
        %457 = vmatmul.f32.gmra.mxu0 %v344
        %v458 = vpop.f32.mrf.mxu0
        %v459 = vadd.f32 %v418, %v458
        %460 = vmatmul.f32.gmra.mxu0 %v345
        %v461 = vpop.f32.mrf.mxu0
        %v462 = vadd.f32 %v421, %v461
        %463 = vmatmul.f32.gmra.mxu0 %v346
        %v464 = vpop.f32.mrf.mxu0
        %v465 = vadd.f32 %v424, %v464
        %466 = vmatmul.f32.gmra.mxu0 %v347
        %v467 = vpop.f32.mrf.mxu0
        %v468 = vadd.f32 %v427, %v467
        %469 = vdwg.mxu0
        %v470 = vld [vmem:[%s315] sm:$0xff]
        %v471 = vld [vmem:[%s315 + $0x8] sm:$0xff]
        %v472 = vld [vmem:[%s315 + $0x10] sm:$0xff]
        %v473 = vld [vmem:[%s315 + $0x18] sm:$0xff]
        %v474 = vld [vmem:[%s315 + $0x20] sm:$0xff]
        %v475 = vld [vmem:[%s315 + $0x28] sm:$0xff]
        %v476 = vld [vmem:[%s315 + $0x30] sm:$0xff]
        %v477 = vld [vmem:[%s315 + $0x38] sm:$0xff]
        %v478 = vadd.f32 %v470, %v447
        %v479 = vadd.f32 %v471, %v450
        %v480 = vadd.f32 %v472, %v453
        %v481 = vadd.f32 %v473, %v456
        %v482 = vadd.f32 %v474, %v459
        %v483 = vadd.f32 %v475, %v462
        %v484 = vadd.f32 %v476, %v465
        %v485 = vadd.f32 %v477, %v468
        %486 = vst [vmem:[%s315] sm:$0xff] %v478
        %487 = vst [vmem:[%s315 + $0x8] sm:$0xff] %v479
        %488 = vst [vmem:[%s315 + $0x10] sm:$0xff] %v480
        %489 = vst [vmem:[%s315 + $0x18] sm:$0xff] %v481
        %490 = vst [vmem:[%s315 + $0x20] sm:$0xff] %v482
        %491 = vst [vmem:[%s315 + $0x28] sm:$0xff] %v483
        %492 = vst [vmem:[%s315 + $0x30] sm:$0xff] %v484
        %493 = vst [vmem:[%s315 + $0x38] sm:$0xff] %v485
        %p494 = scmp.eq.s32.totalorder %s29, 1
        // Predicated region
        $region53: #{tpu_custom_call.1} parent=35 // pred_check
          %p495 = pneg %p494
        $region54: #{tpu_custom_call.1} parent=35 // pred_check_branch
          %497 = sbr.rel (%p495) target = $region56
        $region55: #{tpu_custom_call.1} parent=35 // pred_region
          %v498 = vld [vmem:[%s315] sm:$0xff]
          %v499 = vld [vmem:[%s315 + $0x8] sm:$0xff]
          %v500 = vld [vmem:[%s315 + $0x10] sm:$0xff]
          %v501 = vld [vmem:[%s315 + $0x18] sm:$0xff]
          %v502 = vld [vmem:[%s315 + $0x20] sm:$0xff]
          %v503 = vld [vmem:[%s315 + $0x28] sm:$0xff]
          %v504 = vld [vmem:[%s315 + $0x30] sm:$0xff]
          %v505 = vld [vmem:[%s315 + $0x38] sm:$0xff]
          %v506 = vld [vmem:[%s3] sm:$0x1]
          %v508 = vperm.slane %v506, 0
          %v510 = vadd.f32 %v498, %v508
          %v511 = vadd.f32 %v499, %v508
          %v512 = vadd.f32 %v500, %v508
          %v513 = vadd.f32 %v501, %v508
          %v514 = vadd.f32 %v502, %v508
          %v515 = vadd.f32 %v503, %v508
          %v516 = vadd.f32 %v504, %v508
          %v517 = vadd.f32 %v505, %v508
          %v518 = vmax.f32 %v510, 0.0
          %v519 = vmax.f32 %v511, 0.0
          %v520 = vmax.f32 %v512, 0.0
          %v521 = vmax.f32 %v513, 0.0
          %v522 = vmax.f32 %v514, 0.0
          %v523 = vmax.f32 %v515, 0.0
          %v524 = vmax.f32 %v516, 0.0
          %v525 = vmax.f32 %v517, 0.0
          %526 = vst [vmem:[%s315] sm:$0xff] %v518
          %527 = vst [vmem:[%s315 + $0x8] sm:$0xff] %v519
          %528 = vst [vmem:[%s315 + $0x10] sm:$0xff] %v520
          %529 = vst [vmem:[%s315 + $0x18] sm:$0xff] %v521
          %530 = vst [vmem:[%s315 + $0x20] sm:$0xff] %v522
          %531 = vst [vmem:[%s315 + $0x28] sm:$0xff] %v523
          %532 = vst [vmem:[%s315 + $0x30] sm:$0xff] %v524
          %533 = vst [vmem:[%s315 + $0x38] sm:$0xff] %v525
        $region56: #{tpu_custom_call.1} parent=35 // pred_fallthru
          _
        %s534 = sand.u32 %s145, 1
        %s535 = scalar_lea.sflag [#allocation4], %s534
        %s536 = sand.u32 %s145, 1
        %s537 = smul.addr %s536, 64
        %s538 = scalar_lea.vmem [#allocation8], %s537
        // Predicated region
        $region57: #{tpu_custom_call.1} parent=35 // pred_check
          %p539 = pneg %p155
        $region58: #{tpu_custom_call.1} parent=35 // pred_check_branch
          %541 = sbr.rel (%p539) target = $region60
        $region59: #{tpu_custom_call.1} parent=35 // pred_region
          %s542 = smul.u32 8, %s28
          %544 = vsyncadd %s535, 0
          %s545 = smul.addr %s542, 8
          %s546 = scalar_lea.hbm %s4, %s545
          %s547 = sshll.u32 %s538, 4
          %s548 = int_to_ptr.vmem [resolvable:$true] %s547
          %s549 = sshll.u32 %s546, 4
          %s550 = int_to_ptr.hbm [resolvable:$true] %s549
          %555 = dma.vmem_to_hbm [thread:$0]  %s548, 1024, %s550, %s535, 128, 128, 8
        $region60: #{tpu_custom_call.1} parent=35 // pred_fallthru
          _
      $region36: #{tpu_custom_call.1} parent=5 // pred_fallthru
        _
      %p556 = scmp.le.s32.totalorder 2, %s19
      // Predicated region
      $region61: #{tpu_custom_call.1} parent=5 // pred_check
        %p557 = pneg %p556
      $region62: #{tpu_custom_call.1} parent=5 // pred_check_branch
        %559 = sbr.rel (%p557) target = $region64
      $region63: #{tpu_custom_call.1} parent=5 // pred_region
        %s560 = ssub.s32 %s19, 2
        // Predicated region
        $region65: #{tpu_custom_call.1} parent=63 // pred_check
          %p561 = pneg %p161
        $region66: #{tpu_custom_call.1} parent=63 // pred_check_branch
          %563 = sbr.rel (%p561) target = $region68
        $region67: #{tpu_custom_call.1} parent=63 // pred_region
          %s564 = sand.u32 %s146, 1
          %s565 = scalar_lea.sflag [#allocation4], %s564
          %s566 = sand.u32 %s146, 1
          %s567 = smul.addr %s566, 64
          %s568 = scalar_lea.vmem [#allocation8], %s567
          %570 = dma.done %s565, 1024
        $region68: #{tpu_custom_call.1} parent=63 // pred_fallthru
          _
      $region64: #{tpu_custom_call.1} parent=5 // pred_fallthru
        _
    $region6: #{tpu_custom_call.1} parent=1 // loop_footer
      %s23 = sadd.s32 1, %s19
    $region7: #{tpu_custom_call.1} parent=1 // loop_footer_branch
      %18 = sbr.rel target = $region3
    $region8: #{tpu_custom_call.1} parent=1 // loop_exit
      _
    %571 = vsyncpa [#allocation3], 1
    %s572 = scalar_lea.sflag [#allocation3], 1
    %573 = vsyncpa %s572, 1
    %574 = vsyncpa [#allocation6], 1
    %s575 = scalar_lea.sflag [#allocation6], 1
    %576 = vsyncpa %s575, 1
    %577 = vsyncpa [#allocation4], 1
    %s578 = scalar_lea.sflag [#allocation4], 1
    %579 = vsyncpa %s578, 1

</llo_original>
